<compile_context>
chip_gen: v6e
topology: v6e:2x2x1
jax: 0.10.0
libtpu: 0.0.40
codegen_flags: <defaults>
</compile_context>

<pallas_src>
import jax
import jax.numpy as jnp
from jax import lax
from jax.experimental import pallas as pl
from jax.experimental.pallas import tpu as pltpu

EPS = 1e-5


def _preact_unit_kernel(x_ref, s1_ref, t1_ref, T1_ref, b1_ref,
                        T2_ref, Ti_ref, bi_ref, o_ref):
    # x_ref block: (nb, H, W*Cin); o_ref block: (nb, H, W*Cout)
    nb, h, wcin = x_ref.shape
    wcout = o_ref.shape[2]

    x = x_ref[...].astype(jnp.float32)

    # ---- f_block: BN1 + ReLU1 (eval-mode BN folded to scale/shift) ----
    a1 = jnp.maximum(x * s1_ref[...] + t1_ref[...], 0.0)

    def conv3x3_rows(a, t_ref, bias):
        """3x3 'SAME' conv in (rows, W*C) layout via 3 banded matmuls."""
        n_, h_, k = a.shape
        zrow = jnp.zeros((n_, 1, k), jnp.float32)
        a_m1 = jnp.concatenate([zrow, a[:, :h_ - 1, :]], axis=1)   # row h -> a[h-1]
        a_p1 = jnp.concatenate([a[:, 1:, :], zrow], axis=1)        # row h -> a[h+1]
        m = n_ * h_

        def mm(v, t):
            return jnp.dot(v.reshape(m, k), t,
                           preferred_element_type=jnp.float32)

        y = mm(a_m1, t_ref[0]) + mm(a, t_ref[1]) + mm(a_p1, t_ref[2])
        y = y.reshape(n_, h_, -1)
        if bias is not None:
            y = y + bias
        return y

    # ---- conv1 (3x3) with BN2 folded in (scale->weights, shift->bias),
    #      dropout(p=0) is the identity, then ReLU2 ----
    a2 = jnp.maximum(conv3x3_rows(a1, T1_ref, b1_ref[...]), 0.0)

    # ---- conv2 (3x3) ----
    new_features = conv3x3_rows(a2, T2_ref, None)

    # ---- i_block shortcut: BN_i folded into the 1x1 conv (block-diag matmul) ----
    sc = jnp.dot(x.reshape(nb * h, wcin), Ti_ref[...],
                 preferred_element_type=jnp.float32).reshape(nb, h, wcout)
    sc = sc + bi_ref[...]

    o_ref[...] = (new_features + sc).astype(o_ref.dtype)


def _fold_bn(g, b, m, v):
    s = g / jnp.sqrt(v + EPS)
    return s, b - m * s


def _conv_row_matrices(w_hwio, width):
    """HWIO (3,3,Ci,Co) weights -> (3, width*Ci, width*Co) banded row matrices.

    T[dh][w_in*Ci+ci, w_out*Co+co] = w[dh, (w_in-w_out)+1, ci, co]
                                     if |w_in - w_out| <= 1 else 0
    """
    kh, _, ci, co = w_hwio.shape
    win = jnp.arange(width)
    dw = win[:, None] - win[None, :]                    # w_in - w_out
    valid = (jnp.abs(dw) <= 1).astype(w_hwio.dtype)
    idx = jnp.clip(dw + 1, 0, 2)
    g = w_hwio[:, idx]                                  # (3, W, W, Ci, Co)
    g = g * valid[None, :, :, None, None]
    return jnp.transpose(g, (0, 1, 3, 2, 4)).reshape(kh, width * ci, width * co)


def preact_unit_forward(x_nchw, params, *, batch_block=None):
    """Wrapper: NCHW in / NCHW out; kernel runs in lane-dense (N, H, W*C)."""
    x = jnp.transpose(x_nchw, (0, 2, 3, 1)).astype(jnp.float32)   # NCHW -> NHWC
    N, H, W, Cin = x.shape
    Cout = params['w1'].shape[-1]

    s1, t1 = _fold_bn(params['g1'], params['b1'], params['m1'], params['v1'])
    s2, t2 = _fold_bn(params['g2'], params['b2'], params['m2'], params['v2'])
    si, ti = _fold_bn(params['gi'], params['bi'], params['mi'], params['vi'])

    # conv1 with BN2 folded into its output channels (scale) + per-Cout bias.
    w1f = params['w1'] * s2                                       # (3,3,Cin,Cout)
    T1 = _conv_row_matrices(w1f, W)                               # (3, W*Cin, W*Cout)
    T2 = _conv_row_matrices(params['w2'], W)                      # (3, W*Cout, W*Cout)

    # i_block BN folded entirely into the 1x1 conv -> block-diag matrix + bias.
    wi = params['wi'].reshape(Cin, Cout)
    wif = si[:, None] * wi
    Ti = (jnp.eye(W, dtype=jnp.float32)[:, None, :, None]
          * wif[None, :, None, :]).reshape(W * Cin, W * Cout)
    bias_i = ti @ wi                                              # (Cout,)

    # Per-channel vectors pre-broadcast to lane-dense (1, W*C).
    s1_wc = jnp.tile(s1, W).reshape(1, W * Cin)
    t1_wc = jnp.tile(t1, W).reshape(1, W * Cin)
    b1_wc = jnp.tile(t2, W).reshape(1, W * Cout)
    bi_wc = jnp.tile(bias_i, W).reshape(1, W * Cout)

    x_rows = x.reshape(N, H, W * Cin)                             # lane-dense input

    nb = N if batch_block is None else batch_block
    assert N % nb == 0
    grid = (N // nb,)

    def full(shape):
        return pl.BlockSpec(shape, lambda n: (0,) * len(shape))

    grid_spec = pltpu.PrefetchScalarGridSpec(
        num_scalar_prefetch=0,
        grid=grid,
        in_specs=[
            pl.BlockSpec((nb, H, W * Cin), lambda n: (n, 0, 0)),
            full((1, W * Cin)), full((1, W * Cin)),
            full((3, W * Cin, W * Cout)), full((1, W * Cout)),
            full((3, W * Cout, W * Cout)),
            full((W * Cin, W * Cout)), full((1, W * Cout)),
        ],
        out_specs=pl.BlockSpec((nb, H, W * Cout), lambda n: (n, 0, 0)),
    )

    out_rows = pl.pallas_call(
        _preact_unit_kernel,
        out_shape=jax.ShapeDtypeStruct((N, H, W * Cout), jnp.float32),
        grid_spec=grid_spec,
        compiler_params=pltpu.CompilerParams(
            dimension_semantics=("parallel",)),   # batch axis shards across TCs on v7x
    )(x_rows, s1_wc, t1_wc, T1, b1_wc, T2, Ti, bi_wc)

    out_nhwc = out_rows.reshape(N, H, W, Cout)
    return jnp.transpose(out_nhwc, (0, 3, 1, 2))                  # NHWC -> NCHW


def init_params(key, cin, cout):
    ks = jax.random.split(key, 16)
    n = lambda k, shape, s=0.1: s * jax.random.normal(k, shape, jnp.float32)
    return {
        # BN1 (over Cin)
        'g1': 1.0 + n(ks[0], (cin,)), 'b1': n(ks[1], (cin,)),
        'm1': n(ks[2], (cin,)),
        'v1': jax.random.uniform(ks[3], (cin,), jnp.float32, 0.5, 1.5),
        # conv1 3x3 Cin->Cout (HWIO)
        'w1': n(ks[4], (3, 3, cin, cout)),
        # BN2 (over Cout)
        'g2': 1.0 + n(ks[5], (cout,)), 'b2': n(ks[6], (cout,)),
        'm2': n(ks[7], (cout,)),
        'v2': jax.random.uniform(ks[8], (cout,), jnp.float32, 0.5, 1.5),
        # conv2 3x3 Cout->Cout (HWIO)
        'w2': n(ks[9], (3, 3, cout, cout)),
        # i_block BN (over Cin) + 1x1 conv Cin->Cout (HWIO)
        'gi': 1.0 + n(ks[10], (cin,)), 'bi': n(ks[11], (cin,)),
        'mi': n(ks[12], (cin,)),
        'vi': jax.random.uniform(ks[13], (cin,), jnp.float32, 0.5, 1.5),
        'wi': n(ks[14], (1, 1, cin, cout)),
    }


def reference_forward(x_nchw, p):
    """Plain-JAX reference (eval-mode BN), for correctness checking."""
    x = jnp.transpose(x_nchw, (0, 2, 3, 1)).astype(jnp.float32)

    def bn(t, g, b, m, v):
        return (t - m) / jnp.sqrt(v + EPS) * g + b

    def conv(t, w, pad):
        return lax.conv_general_dilated(
            t, w, (1, 1), pad, dimension_numbers=('NHWC', 'HWIO', 'NHWC'))

    a = jax.nn.relu(bn(x, p['g1'], p['b1'], p['m1'], p['v1']))
    y = conv(a, p['w1'], 'SAME')
    a2 = jax.nn.relu(bn(y, p['g2'], p['b2'], p['m2'], p['v2']))
    y2 = conv(a2, p['w2'], 'SAME')
    xi = bn(x, p['gi'], p['bi'], p['mi'], p['vi'])
    sc = conv(xi, p['wi'], 'VALID')
    return jnp.transpose(y2 + sc, (0, 3, 1, 2))


if __name__ == "__main__":
    key = jax.random.PRNGKey(0)
    k_x, k_p = jax.random.split(key)

    N, Cin, H, W = 2, 4, 16, 16
    Cout = 8                                 # num_output_features (expansion=1)
    x = jax.random.normal(k_x, (N, Cin, H, W), jnp.float32)    # NCHW like PyTorch
    params = init_params(k_p, Cin, Cout)

    out = preact_unit_forward(x, params)
    out = jax.block_until_ready(out)

    ref = reference_forward(x, params)
    assert out.shape == (N, Cout, H, W)
    assert jnp.allclose(out, ref, rtol=1e-4, atol=1e-3), "mismatch vs reference"

    print("KERNEL_OK")
</pallas_src>

<mosaic_0001>
module attributes {stable_mosaic.version = 11 : i64} {
  func.func @_preact_unit_kernel(%arg0: i32, %arg1: memref<2x16x64xf32, #tpu.memory_space<vmem>>, %arg2: memref<1x64xf32, #tpu.memory_space<vmem>>, %arg3: memref<1x64xf32, #tpu.memory_space<vmem>>, %arg4: memref<3x64x128xf32, #tpu.memory_space<vmem>>, %arg5: memref<1x128xf32, #tpu.memory_space<vmem>>, %arg6: memref<3x128x128xf32, #tpu.memory_space<vmem>>, %arg7: memref<64x128xf32, #tpu.memory_space<vmem>>, %arg8: memref<1x128xf32, #tpu.memory_space<vmem>>, %arg9: memref<2x16x128xf32, #tpu.memory_space<vmem>>) attributes {dimension_semantics = [#tpu.dimension_semantics<parallel>], iteration_bounds = array<i64: 1>, scalar_prefetch = 0 : i64, scratch_operands = 0 : i64, tpu.core_type = #tpu.core_type<tc>, window_params = [{transform_indices = @transform_0, window_bounds = array<i64: 2, 16, 64>}, {pipeline_mode = #tpu.pipeline_mode<synchronous>, transform_indices = @transform_1, window_bounds = array<i64: 1, 64>}, {pipeline_mode = #tpu.pipeline_mode<synchronous>, transform_indices = @transform_2, window_bounds = array<i64: 1, 64>}, {pipeline_mode = #tpu.pipeline_mode<synchronous>, transform_indices = @transform_3, window_bounds = array<i64: 3, 64, 128>}, {pipeline_mode = #tpu.pipeline_mode<synchronous>, transform_indices = @transform_4, window_bounds = array<i64: 1, 128>}, {pipeline_mode = #tpu.pipeline_mode<synchronous>, transform_indices = @transform_5, window_bounds = array<i64: 3, 128, 128>}, {pipeline_mode = #tpu.pipeline_mode<synchronous>, transform_indices = @transform_6, window_bounds = array<i64: 64, 128>}, {pipeline_mode = #tpu.pipeline_mode<synchronous>, transform_indices = @transform_7, window_bounds = array<i64: 1, 128>}, {transform_indices = @transform_8, window_bounds = array<i64: 2, 16, 128>}]} {
    %c0 = arith.constant 0 : index
    %c0_0 = arith.constant 0 : index
    %c0_1 = arith.constant 0 : index
    %0 = vector.load %arg1[%c0, %c0_0, %c0_1] : memref<2x16x64xf32, #tpu.memory_space<vmem>>, vector<2x16x64xf32>
    %c0_2 = arith.constant 0 : index
    %c0_3 = arith.constant 0 : index
    %1 = vector.load %arg2[%c0_2, %c0_3] : memref<1x64xf32, #tpu.memory_space<vmem>>, vector<1x64xf32>
    %2 = vector.shape_cast %1 : vector<1x64xf32> to vector<1x1x64xf32>
    %3 = vector.broadcast %2 : vector<1x1x64xf32> to vector<2x16x64xf32>
    %4 = arith.mulf %0, %3 : vector<2x16x64xf32>
    %c0_4 = arith.constant 0 : index
    %c0_5 = arith.constant 0 : index
    %5 = vector.load %arg3[%c0_4, %c0_5] : memref<1x64xf32, #tpu.memory_space<vmem>>, vector<1x64xf32>
    %6 = vector.shape_cast %5 : vector<1x64xf32> to vector<1x1x64xf32>
    %7 = vector.broadcast %6 : vector<1x1x64xf32> to vector<2x16x64xf32>
    %8 = arith.addf %4, %7 : vector<2x16x64xf32>
    %cst = arith.constant 0.000000e+00 : f32
    %9 = vector.broadcast %cst : f32 to vector<2x16x64xf32>
    %10 = arith.maximumf %8, %9 : vector<2x16x64xf32>
    %c0_6 = arith.constant 0 : index
    %c0_7 = arith.constant 0 : index
    %11 = vector.load %arg5[%c0_6, %c0_7] : memref<1x128xf32, #tpu.memory_space<vmem>>, vector<1x128xf32>
    %cst_8 = arith.constant 0.000000e+00 : f32
    %12 = vector.broadcast %cst_8 : f32 to vector<2x1x64xf32>
    %13 = vector.extract_strided_slice %10 {offsets = [0, 0, 0], sizes = [2, 15, 64], strides = [1, 1, 1]} : vector<2x16x64xf32> to vector<2x15x64xf32>
    %14 = tpu.concatenate %12, %13 in 1 : vector<2x1x64xf32>, vector<2x15x64xf32> -> vector<2x16x64xf32>
    %15 = vector.extract_strided_slice %10 {offsets = [0, 1, 0], sizes = [2, 15, 64], strides = [1, 1, 1]} : vector<2x16x64xf32> to vector<2x15x64xf32>
    %16 = tpu.concatenate %15, %12 in 1 : vector<2x15x64xf32>, vector<2x1x64xf32> -> vector<2x16x64xf32>
    %c0_9 = arith.constant 0 : index
    %c0_10 = arith.constant 0 : index
    %c0_11 = arith.constant 0 : index
    %17 = vector.load %arg4[%c0_9, %c0_10, %c0_11] : memref<3x64x128xf32, #tpu.memory_space<vmem>>, vector<1x64x128xf32>
    %18 = vector.shape_cast %17 : vector<1x64x128xf32> to vector<64x128xf32>
    %19 = vector.shape_cast %14 : vector<2x16x64xf32> to vector<32x64xf32>
    %cst_12 = arith.constant dense<0.000000e+00> : vector<32x128xf32>
    %20 = tpu.matmul %19, %18, %cst_12 {dimension_numbers = #tpu.dot_dimension_numbers<[1], [0], [0], [1], [0, 0, 1, 1], [], []>} : vector<32x64xf32>, vector<64x128xf32>, vector<32x128xf32> -> vector<32x128xf32>
    %c1 = arith.constant 1 : index
    %c0_13 = arith.constant 0 : index
    %c0_14 = arith.constant 0 : index
    %21 = vector.load %arg4[%c1, %c0_13, %c0_14] : memref<3x64x128xf32, #tpu.memory_space<vmem>>, vector<1x64x128xf32>
    %22 = vector.shape_cast %21 : vector<1x64x128xf32> to vector<64x128xf32>
    %23 = vector.shape_cast %10 : vector<2x16x64xf32> to vector<32x64xf32>
    %cst_15 = arith.constant dense<0.000000e+00> : vector<32x128xf32>
    %24 = tpu.matmul %23, %22, %cst_15 {dimension_numbers = #tpu.dot_dimension_numbers<[1], [0], [0], [1], [0, 0, 1, 1], [], []>} : vector<32x64xf32>, vector<64x128xf32>, vector<32x128xf32> -> vector<32x128xf32>
    %25 = arith.addf %20, %24 : vector<32x128xf32>
    %c2 = arith.constant 2 : index
    %c0_16 = arith.constant 0 : index
    %c0_17 = arith.constant 0 : index
    %26 = vector.load %arg4[%c2, %c0_16, %c0_17] : memref<3x64x128xf32, #tpu.memory_space<vmem>>, vector<1x64x128xf32>
    %27 = vector.shape_cast %26 : vector<1x64x128xf32> to vector<64x128xf32>
    %28 = vector.shape_cast %16 : vector<2x16x64xf32> to vector<32x64xf32>
    %cst_18 = arith.constant dense<0.000000e+00> : vector<32x128xf32>
    %29 = tpu.matmul %28, %27, %cst_18 {dimension_numbers = #tpu.dot_dimension_numbers<[1], [0], [0], [1], [0, 0, 1, 1], [], []>} : vector<32x64xf32>, vector<64x128xf32>, vector<32x128xf32> -> vector<32x128xf32>
    %30 = arith.addf %25, %29 : vector<32x128xf32>
    %31 = vector.shape_cast %30 : vector<32x128xf32> to vector<2x16x128xf32>
    %32 = vector.shape_cast %11 : vector<1x128xf32> to vector<1x1x128xf32>
    %33 = vector.broadcast %32 : vector<1x1x128xf32> to vector<2x16x128xf32>
    %34 = arith.addf %31, %33 : vector<2x16x128xf32>
    %cst_19 = arith.constant 0.000000e+00 : f32
    %35 = vector.broadcast %cst_19 : f32 to vector<2x16x128xf32>
    %36 = arith.maximumf %34, %35 : vector<2x16x128xf32>
    %cst_20 = arith.constant 0.000000e+00 : f32
    %37 = vector.broadcast %cst_20 : f32 to vector<2x1x128xf32>
    %38 = vector.extract_strided_slice %36 {offsets = [0, 0, 0], sizes = [2, 15, 128], strides = [1, 1, 1]} : vector<2x16x128xf32> to vector<2x15x128xf32>
    %39 = tpu.concatenate %37, %38 in 1 : vector<2x1x128xf32>, vector<2x15x128xf32> -> vector<2x16x128xf32>
    %40 = vector.extract_strided_slice %36 {offsets = [0, 1, 0], sizes = [2, 15, 128], strides = [1, 1, 1]} : vector<2x16x128xf32> to vector<2x15x128xf32>
    %41 = tpu.concatenate %40, %37 in 1 : vector<2x15x128xf32>, vector<2x1x128xf32> -> vector<2x16x128xf32>
    %c0_21 = arith.constant 0 : index
    %c0_22 = arith.constant 0 : index
    %c0_23 = arith.constant 0 : index
    %42 = vector.load %arg6[%c0_21, %c0_22, %c0_23] : memref<3x128x128xf32, #tpu.memory_space<vmem>>, vector<1x128x128xf32>
    %43 = vector.shape_cast %42 : vector<1x128x128xf32> to vector<128x128xf32>
    %44 = vector.shape_cast %39 : vector<2x16x128xf32> to vector<32x128xf32>
    %cst_24 = arith.constant dense<0.000000e+00> : vector<32x128xf32>
    %45 = tpu.matmul %44, %43, %cst_24 {dimension_numbers = #tpu.dot_dimension_numbers<[1], [0], [0], [1], [0, 0, 1, 1], [], []>} : vector<32x128xf32>, vector<128x128xf32>, vector<32x128xf32> -> vector<32x128xf32>
    %c1_25 = arith.constant 1 : index
    %c0_26 = arith.constant 0 : index
    %c0_27 = arith.constant 0 : index
    %46 = vector.load %arg6[%c1_25, %c0_26, %c0_27] : memref<3x128x128xf32, #tpu.memory_space<vmem>>, vector<1x128x128xf32>
    %47 = vector.shape_cast %46 : vector<1x128x128xf32> to vector<128x128xf32>
    %48 = vector.shape_cast %36 : vector<2x16x128xf32> to vector<32x128xf32>
    %cst_28 = arith.constant dense<0.000000e+00> : vector<32x128xf32>
    %49 = tpu.matmul %48, %47, %cst_28 {dimension_numbers = #tpu.dot_dimension_numbers<[1], [0], [0], [1], [0, 0, 1, 1], [], []>} : vector<32x128xf32>, vector<128x128xf32>, vector<32x128xf32> -> vector<32x128xf32>
    %50 = arith.addf %45, %49 : vector<32x128xf32>
    %c2_29 = arith.constant 2 : index
    %c0_30 = arith.constant 0 : index
    %c0_31 = arith.constant 0 : index
    %51 = vector.load %arg6[%c2_29, %c0_30, %c0_31] : memref<3x128x128xf32, #tpu.memory_space<vmem>>, vector<1x128x128xf32>
    %52 = vector.shape_cast %51 : vector<1x128x128xf32> to vector<128x128xf32>
    %53 = vector.shape_cast %41 : vector<2x16x128xf32> to vector<32x128xf32>
    %cst_32 = arith.constant dense<0.000000e+00> : vector<32x128xf32>
    %54 = tpu.matmul %53, %52, %cst_32 {dimension_numbers = #tpu.dot_dimension_numbers<[1], [0], [0], [1], [0, 0, 1, 1], [], []>} : vector<32x128xf32>, vector<128x128xf32>, vector<32x128xf32> -> vector<32x128xf32>
    %55 = arith.addf %50, %54 : vector<32x128xf32>
    %56 = vector.shape_cast %55 : vector<32x128xf32> to vector<2x16x128xf32>
    %57 = vector.shape_cast %0 : vector<2x16x64xf32> to vector<32x64xf32>
    %c0_33 = arith.constant 0 : index
    %c0_34 = arith.constant 0 : index
    %58 = vector.load %arg7[%c0_33, %c0_34] : memref<64x128xf32, #tpu.memory_space<vmem>>, vector<64x128xf32>
    %cst_35 = arith.constant dense<0.000000e+00> : vector<32x128xf32>
    %59 = tpu.matmul %57, %58, %cst_35 {dimension_numbers = #tpu.dot_dimension_numbers<[1], [0], [0], [1], [0, 0, 1, 1], [], []>} : vector<32x64xf32>, vector<64x128xf32>, vector<32x128xf32> -> vector<32x128xf32>
    %60 = vector.shape_cast %59 : vector<32x128xf32> to vector<2x16x128xf32>
    %c0_36 = arith.constant 0 : index
    %c0_37 = arith.constant 0 : index
    %61 = vector.load %arg8[%c0_36, %c0_37] : memref<1x128xf32, #tpu.memory_space<vmem>>, vector<1x128xf32>
    %62 = vector.shape_cast %61 : vector<1x128xf32> to vector<1x1x128xf32>
    %63 = vector.broadcast %62 : vector<1x1x128xf32> to vector<2x16x128xf32>
    %64 = arith.addf %60, %63 : vector<2x16x128xf32>
    %65 = arith.addf %56, %64 : vector<2x16x128xf32>
    %c0_38 = arith.constant 0 : index
    %c0_39 = arith.constant 0 : index
    %c0_40 = arith.constant 0 : index
    %66 = vector.load %arg9[%c0_38, %c0_39, %c0_40] : memref<2x16x128xf32, #tpu.memory_space<vmem>>, vector<2x16x128xf32>
    tpu.vector_store %arg9[%c0_38, %c0_39, %c0_40], %65 {strides = array<i32>} : memref<2x16x128xf32, #tpu.memory_space<vmem>>, vector<2x16x128xf32>,
    return
  }
  func.func @transform_0(%arg0: i32) -> (i32, i32, i32) {
    %c0_i32 = arith.constant 0 : i32
    %c0_i32_0 = arith.constant 0 : i32
    %c0_i32_1 = arith.constant 0 : i32
    return %arg0, %c0_i32, %c0_i32_0 : i32, i32, i32
  }
  func.func @transform_1(%arg0: i32) -> (i32, i32) {
    %c0_i32 = arith.constant 0 : i32
    %c0_i32_0 = arith.constant 0 : i32
    %c0_i32_1 = arith.constant 0 : i32
    return %c0_i32, %c0_i32_0 : i32, i32
  }
  func.func @transform_2(%arg0: i32) -> (i32, i32) {
    %c0_i32 = arith.constant 0 : i32
    %c0_i32_0 = arith.constant 0 : i32
    %c0_i32_1 = arith.constant 0 : i32
    return %c0_i32, %c0_i32_0 : i32, i32
  }
  func.func @transform_3(%arg0: i32) -> (i32, i32, i32) {
    %c0_i32 = arith.constant 0 : i32
    %c0_i32_0 = arith.constant 0 : i32
    %c0_i32_1 = arith.constant 0 : i32
    %c0_i32_2 = arith.constant 0 : i32
    return %c0_i32, %c0_i32_0, %c0_i32_1 : i32, i32, i32
  }
  func.func @transform_4(%arg0: i32) -> (i32, i32) {
    %c0_i32 = arith.constant 0 : i32
    %c0_i32_0 = arith.constant 0 : i32
    %c0_i32_1 = arith.constant 0 : i32
    return %c0_i32, %c0_i32_0 : i32, i32
  }
  func.func @transform_5(%arg0: i32) -> (i32, i32, i32) {
    %c0_i32 = arith.constant 0 : i32
    %c0_i32_0 = arith.constant 0 : i32
    %c0_i32_1 = arith.constant 0 : i32
    %c0_i32_2 = arith.constant 0 : i32
    return %c0_i32, %c0_i32_0, %c0_i32_1 : i32, i32, i32
  }
  func.func @transform_6(%arg0: i32) -> (i32, i32) {
    %c0_i32 = arith.constant 0 : i32
    %c0_i32_0 = arith.constant 0 : i32
    %c0_i32_1 = arith.constant 0 : i32
    return %c0_i32, %c0_i32_0 : i32, i32
  }
  func.func @transform_7(%arg0: i32) -> (i32, i32) {
    %c0_i32 = arith.constant 0 : i32
    %c0_i32_0 = arith.constant 0 : i32
    %c0_i32_1 = arith.constant 0 : i32
    return %c0_i32, %c0_i32_0 : i32, i32
  }
  func.func @transform_8(%arg0: i32) -> (i32, i32, i32) {
    %c0_i32 = arith.constant 0 : i32
    %c0_i32_0 = arith.constant 0 : i32
    %c0_i32_1 = arith.constant 0 : i32
    return %arg0, %c0_i32, %c0_i32_0 : i32, i32, i32
  }
}

</mosaic_0001>

<llo_original>
// kernel: tpu_custom_call.1
$region0: #{tpu_custom_call.1}
  #allocation0 [shape = 'u32[]', space=smem, size = 0x4, offset = 0x4, fixed_abs, tag = 'smem constant byte address 0x4 - core index']
  #allocation1 [shape = 'u32[144,128]{1,0:T(1,128)}', space=vmem, size = 0x12000, scoped, tag = 'internal scratch']
  %s0 = inlined_call_operand.hbm [shape: f32[2,16,64], index: 0, kind: input, shape index: {}]
  %s1 = inlined_call_operand.vmem [shape: f32[1,64], index: 1, kind: input, shape index: {}]
  %s2 = inlined_call_operand.vmem [shape: f32[1,64], index: 2, kind: input, shape index: {}]
  %s3 = inlined_call_operand.hbm [shape: f32[3,64,128], index: 3, kind: input, shape index: {}]
  %s4 = inlined_call_operand.vmem [shape: f32[1,128], index: 4, kind: input, shape index: {}]
  %s5 = inlined_call_operand.hbm [shape: f32[3,128,128], index: 5, kind: input, shape index: {}]
  %s6 = inlined_call_operand.hbm [shape: f32[64,128], index: 6, kind: input, shape index: {}]
  %s7 = inlined_call_operand.vmem [shape: f32[1,128], index: 7, kind: input, shape index: {}]
  %s8 = inlined_call_operand.hbm [shape: f32[2,16,128], index: 8, kind: output, shape index: {}]
  %s9 = sld [smem:[#allocation0]]
  $region58: #{tpu_custom_call.1} parent=0
    _
  %s11 = ssub.s32 1, %s9
  %s12 = scalar_select 0, %s11, %s9
  $region1: #{tpu_custom_call.1} parent=0
    #allocation2 [shape = 'u8[16384]{0}', space=vmem, size = 0x4000, scoped, tag = 'input window, operand 0, single buffered']
    #allocation3 [shape = 's32[1]{0}', space=sflag, size = 0x4, scoped, tag = 'scoped memory for tpu_custom_call.1']
    #allocation4 [shape = 's32[1]{0}', space=sflag, size = 0x4, scoped, tag = 'scoped memory for tpu_custom_call.1']
    #allocation5 [shape = 'u8[98304]{0}', space=vmem, size = 0x18000, scoped, tag = 'input window, operand 3, single buffered']
    #allocation6 [shape = 's32[1]{0}', space=sflag, size = 0x4, scoped, tag = 'scoped memory for tpu_custom_call.1']
    #allocation7 [shape = 'u8[196608]{0}', space=vmem, size = 0x30000, scoped, tag = 'input window, operand 5, single buffered']
    #allocation8 [shape = 'u8[32768]{0}', space=vmem, size = 0x8000, scoped, tag = 'input window, operand 6, single buffered']
    #allocation9 [shape = 's32[1]{0}', space=sflag, size = 0x4, scoped, tag = 'scoped memory for tpu_custom_call.1']
    #allocation10 [shape = 'u8[16384]{0}', space=vmem, size = 0x4000, scoped, tag = 'output window, operand 0, single buffered']
    %13 = vsyncpa [#allocation3], 0
    %14 = vsyncpa [#allocation6], 0
    %15 = vsyncpa [#allocation9], 0
    %16 = vsyncpa [#allocation4], 0
    // Predicated region
    $region2: #{tpu_custom_call.1} parent=1 // pred_check
      _
    $region3: #{tpu_custom_call.1} parent=1 // pred_check_branch
      %18 = sbr.rel (0) target = $region5
    $region4: #{tpu_custom_call.1} parent=1 // pred_region
      %s20 = ssub.s32 512, 512
      %21 = vsyncadd [#allocation3], %s20
      %s22 = sshll.u32 [#allocation2], 4
      %s23 = int_to_ptr.vmem [resolvable:$true] %s22
      %28 = dma.hbm_to_vmem [thread:$0]  %s0, 512, %s23, [#allocation3], 128, 128, 8
    $region5: #{tpu_custom_call.1} parent=1 // pred_fallthru
      _
    // Predicated region
    $region6: #{tpu_custom_call.1} parent=1 // pred_check
      _
    $region7: #{tpu_custom_call.1} parent=1 // pred_check_branch
      %30 = sbr.rel (0) target = $region9
    $region8: #{tpu_custom_call.1} parent=1 // pred_region
      _
    $region9: #{tpu_custom_call.1} parent=1 // pred_fallthru
      _
    // Predicated region
    $region10: #{tpu_custom_call.1} parent=1 // pred_check
      _
    $region11: #{tpu_custom_call.1} parent=1 // pred_check_branch
      %32 = sbr.rel (0) target = $region13
    $region12: #{tpu_custom_call.1} parent=1 // pred_region
      _
    $region13: #{tpu_custom_call.1} parent=1 // pred_fallthru
      _
    // Predicated region
    $region14: #{tpu_custom_call.1} parent=1 // pred_check
      _
    $region15: #{tpu_custom_call.1} parent=1 // pred_check_branch
      %34 = sbr.rel (0) target = $region17
    $region16: #{tpu_custom_call.1} parent=1 // pred_region
      %s36 = ssub.s32 3072, 3072
      %37 = vsyncadd [#allocation6], %s36
      %s38 = sshll.u32 [#allocation5], 4
      %s39 = int_to_ptr.vmem [resolvable:$true] %s38
      %44 = dma.hbm_to_vmem [thread:$0]  %s3, 3072, %s39, [#allocation6], 128, 128, 8
    $region17: #{tpu_custom_call.1} parent=1 // pred_fallthru
      _
    // Predicated region
    $region18: #{tpu_custom_call.1} parent=1 // pred_check
      _
    $region19: #{tpu_custom_call.1} parent=1 // pred_check_branch
      %46 = sbr.rel (0) target = $region21
    $region20: #{tpu_custom_call.1} parent=1 // pred_region
      _
    $region21: #{tpu_custom_call.1} parent=1 // pred_fallthru
      _
    // Predicated region
    $region22: #{tpu_custom_call.1} parent=1 // pred_check
      _
    $region23: #{tpu_custom_call.1} parent=1 // pred_check_branch
      %48 = sbr.rel (0) target = $region25
    $region24: #{tpu_custom_call.1} parent=1 // pred_region
      %s50 = ssub.s32 6144, 6144
      %51 = vsyncadd [#allocation6], %s50
      %s52 = sshll.u32 [#allocation7], 4
      %s53 = int_to_ptr.vmem [resolvable:$true] %s52
      %58 = dma.hbm_to_vmem [thread:$0]  %s5, 6144, %s53, [#allocation6], 128, 128, 8
    $region25: #{tpu_custom_call.1} parent=1 // pred_fallthru
      _
    // Predicated region
    $region26: #{tpu_custom_call.1} parent=1 // pred_check
      _
    $region27: #{tpu_custom_call.1} parent=1 // pred_check_branch
      %60 = sbr.rel (0) target = $region29
    $region28: #{tpu_custom_call.1} parent=1 // pred_region
      %s62 = ssub.s32 1024, 1024
      %63 = vsyncadd [#allocation9], %s62
      %s64 = sshll.u32 [#allocation8], 4
      %s65 = int_to_ptr.vmem [resolvable:$true] %s64
      %70 = dma.hbm_to_vmem [thread:$0]  %s6, 1024, %s65, [#allocation9], 128, 128, 8
    $region29: #{tpu_custom_call.1} parent=1 // pred_fallthru
      _
    // Predicated region
    $region30: #{tpu_custom_call.1} parent=1 // pred_check
      _
    $region31: #{tpu_custom_call.1} parent=1 // pred_check_branch
      %72 = sbr.rel (0) target = $region33
    $region32: #{tpu_custom_call.1} parent=1 // pred_region
      _
    $region33: #{tpu_custom_call.1} parent=1 // pred_fallthru
      _
    // Predicated region
    $region34: #{tpu_custom_call.1} parent=1 // pred_check
      _
    $region35: #{tpu_custom_call.1} parent=1 // pred_check_branch
      %74 = sbr.rel (0) target = $region37
    $region36: #{tpu_custom_call.1} parent=1 // pred_region
      %75 = dma.done [#allocation3], 512
    $region37: #{tpu_custom_call.1} parent=1 // pred_fallthru
      _
    // Predicated region
    $region38: #{tpu_custom_call.1} parent=1 // pred_check
      _
    $region39: #{tpu_custom_call.1} parent=1 // pred_check_branch
      %77 = sbr.rel (0) target = $region41
    $region40: #{tpu_custom_call.1} parent=1 // pred_region
      %78 = dma.done [#allocation6], 3072
    $region41: #{tpu_custom_call.1} parent=1 // pred_fallthru
      _
    // Predicated region
    $region42: #{tpu_custom_call.1} parent=1 // pred_check
      _
    $region43: #{tpu_custom_call.1} parent=1 // pred_check_branch
      %80 = sbr.rel (0) target = $region45
    $region44: #{tpu_custom_call.1} parent=1 // pred_region
      %81 = dma.done [#allocation6], 6144
    $region45: #{tpu_custom_call.1} parent=1 // pred_fallthru
      _
    // Predicated region
    $region46: #{tpu_custom_call.1} parent=1 // pred_check
      _
    $region47: #{tpu_custom_call.1} parent=1 // pred_check_branch
      %83 = sbr.rel (0) target = $region49
    $region48: #{tpu_custom_call.1} parent=1 // pred_region
      %84 = dma.done [#allocation9], 1024
    $region49: #{tpu_custom_call.1} parent=1 // pred_fallthru
      _
    %v85 = vld [vmem:[#allocation2] sm:$0xff]
    %v86 = vld [vmem:[#allocation2 + $0x8] sm:$0xff]
    %v87 = vld [vmem:[#allocation2 + $0x10] sm:$0xff]
    %v88 = vld [vmem:[#allocation2 + $0x18] sm:$0xff]
    %v89 = vld [vmem:[%s1] sm:$0x1]
    %v91 = vlaneseq
    %v92 = vshrl.u32 %v91, 7
    %v93 = vsub.s32 0, %v92
    %v94 = vrot.slane %v89, %v93
    %v96 = vmul.f32 %v85, %v94
    %v97 = vmul.f32 %v86, %v94
    %v98 = vmul.f32 %v87, %v94
    %v99 = vmul.f32 %v88, %v94
    %v100 = vld [vmem:[%s2] sm:$0x1]
    %v102 = vlaneseq
    %v103 = vshrl.u32 %v102, 7
    %v104 = vsub.s32 0, %v103
    %v105 = vrot.slane %v100, %v104
    %v107 = vadd.f32 %v96, %v105
    %v108 = vadd.f32 %v97, %v105
    %v109 = vadd.f32 %v98, %v105
    %v110 = vadd.f32 %v99, %v105
    %v111 = vmax.f32 %v107, 0.0
    %v112 = vmax.f32 %v108, 0.0
    %v113 = vmax.f32 %v109, 0.0
    %v114 = vmax.f32 %v110, 0.0
    %v115 = vld [vmem:[%s4] sm:$0x1]
    %vm120 = vcmask 1040384
    %v121 = vrot.slane %v111, 7
    %v122 = vrot.slane %v112, 7
    %v123 = vsel %vm120, %v121, %v122
    %v124 = vrot.slane %v113, 7
    %v125 = vrot.slane %v114, 7
    %v126 = vsel %vm120, %v124, %v125
    %v129 = vsel %vm120, 0.0, %v121
    %v130 = vsel %vm120, 0.0, %v124
    %vm131 = vcmask 1046528
    %v132 = vrot.slane %v111, 1
    %v133 = vrot.slane %v112, 1
    %v134 = vsel %vm131, %v132, %v133
    %v135 = vrot.slane %v113, 1
    %v136 = vrot.slane %v114, 1
    %v137 = vsel %vm131, %v135, %v136
    %v140 = vsel %vm131, %v133, 0.0
    %v141 = vsel %vm131, %v136, 0.0
    %v142 = vld [vmem:[#allocation5] sm:$0xff]
    %v143 = vld [vmem:[#allocation5 + $0x8] sm:$0xff]
    %v144 = vld [vmem:[#allocation5 + $0x10] sm:$0xff]
    %v145 = vld [vmem:[#allocation5 + $0x18] sm:$0xff]
    %v146 = vld [vmem:[#allocation5 + $0x20] sm:$0xff]
    %v147 = vld [vmem:[#allocation5 + $0x28] sm:$0xff]
    %v148 = vld [vmem:[#allocation5 + $0x30] sm:$0xff]
    %v149 = vld [vmem:[#allocation5 + $0x38] sm:$0xff]
    %s150 = scalar_lea.vmem [#allocation5], 64
    %v151 = vld [vmem:[%s150] sm:$0xff]
    %v152 = vld [vmem:[%s150 + $0x8] sm:$0xff]
    %v153 = vld [vmem:[%s150 + $0x10] sm:$0xff]
    %v154 = vld [vmem:[%s150 + $0x18] sm:$0xff]
    %v155 = vld [vmem:[%s150 + $0x20] sm:$0xff]
    %v156 = vld [vmem:[%s150 + $0x28] sm:$0xff]
    %v157 = vld [vmem:[%s150 + $0x30] sm:$0xff]
    %v158 = vld [vmem:[%s150 + $0x38] sm:$0xff]
    %vm159 = vcmask 523264
    %v160 = vsel %vm159, %v111, 0
    %v162 = vsel %vm159, %v112, 0
    %v164 = vsel %vm159, %v113, 0
    %v166 = vsel %vm159, %v114, 0
    %168 = vmatprep.subr.mxu0 0.0
    %169 = vmatpush1.msra.mxu0 0.0
    %170 = vmatprep.subr.mxu0 0.0
    %171 = vmatpush1.msra.mxu0 0.0
    %172 = vmatprep.subr.mxu0 0.0
    %173 = vmatpush1.msra.mxu0 0.0
    %174 = vmatprep.subr.mxu0 0.0
    %175 = vmatpush1.msra.mxu0 0.0
    %176 = vmatprep.subr.mxu0 0.0
    %177 = vmatpush1.msra.mxu0 0.0
    %178 = vmatprep.subr.mxu0 0.0
    %179 = vmatpush1.msra.mxu0 0.0
    %180 = vmatprep.subr.mxu0 0.0
    %181 = vmatpush1.msra.mxu0 0.0
    %182 = vmatprep.subr.mxu0 0.0
    %183 = vmatpush1.msra.mxu0 0.0
    %184 = vmatprep.subr.mxu0 0.0
    %185 = vmatpush1.msra.mxu0 %v158
    %186 = vmatprep.subr.mxu0 0.0
    %187 = vmatpush1.msra.mxu0 %v157
    %188 = vmatprep.subr.mxu0 0.0
    %189 = vmatpush1.msra.mxu0 %v156
    %190 = vmatprep.subr.mxu0 0.0
    %191 = vmatpush1.msra.mxu0 %v155
    %192 = vmatprep.subr.mxu0 0.0
    %193 = vmatpush1.msra.mxu0 %v154
    %194 = vmatprep.subr.mxu0 0.0
    %195 = vmatpush1.msra.mxu0 %v153
    %196 = vmatprep.subr.mxu0 0.0
    %197 = vmatpush1.msra.mxu0 %v152
    %198 = vmatprep.subr.mxu0 0.0
    %199 = vmatpush1.msra.mxu0 %v151
    %200 = vmatprep.subr.mxu0 0.0
    %201 = vmatpush2.msra.mxu0 0.0
    %202 = vmatprep.subr.mxu0 0.0
    %203 = vmatpush2.msra.mxu0 0.0
    %204 = vmatprep.subr.mxu0 0.0
    %205 = vmatpush2.msra.mxu0 0.0
    %206 = vmatprep.subr.mxu0 0.0
    %207 = vmatpush2.msra.mxu0 0.0
    %208 = vmatprep.subr.mxu0 0.0
    %209 = vmatpush2.msra.mxu0 0.0
    %210 = vmatprep.subr.mxu0 0.0
    %211 = vmatpush2.msra.mxu0 0.0
    %212 = vmatprep.subr.mxu0 0.0
    %213 = vmatpush2.msra.mxu0 0.0
    %214 = vmatprep.subr.mxu0 0.0
    %215 = vmatpush2.msra.mxu0 0.0
    %216 = vmatprep.subr.mxu0 0.0
    %217 = vmatpush2.msra.mxu0 0.0
    %218 = vmatprep.subr.mxu0 0.0
    %219 = vmatpush2.msra.mxu0 0.0
    %220 = vmatprep.subr.mxu0 0.0
    %221 = vmatpush2.msra.mxu0 0.0
    %222 = vmatprep.subr.mxu0 0.0
    %223 = vmatpush2.msra.mxu0 0.0
    %224 = vmatprep.subr.mxu0 0.0
    %225 = vmatpush2.msra.mxu0 0.0
    %226 = vmatprep.subr.mxu0 0.0
    %227 = vmatpush2.msra.mxu0 0.0
    %228 = vmatprep.subr.mxu0 0.0
    %229 = vmatpush2.msra.mxu0 0.0
    %230 = vmatprep.subr.mxu0 0.0
    %231 = vmatpush2.msra.mxu0 0.0
    %232 = vmatprep.mubr.f32.mxu0 0.0
    %233 = vmatmul.mubr.f32.gmra.mxu0 %v160
    %v234 = vpop.f32.mrf.mxu0
    %v235 = vadd.f32 0.0, %v234
    %v236 = vpop.f32.mrf.mxu0
    %237 = vmatprep.mubr.f32.mxu0 0.0
    %238 = vmatmul.mubr.f32.gmra.mxu0 %v162
    %v239 = vpop.f32.mrf.mxu0
    %v240 = vadd.f32 0.0, %v239
    %v241 = vpop.f32.mrf.mxu0
    %242 = vmatprep.mubr.f32.mxu0 0.0
    %243 = vmatmul.mubr.f32.gmra.mxu0 %v164
    %v244 = vpop.f32.mrf.mxu0
    %v245 = vadd.f32 0.0, %v244
    %v246 = vpop.f32.mrf.mxu0
    %247 = vmatprep.mubr.f32.mxu0 0.0
    %248 = vmatmul.mubr.f32.gmra.mxu0 %v166
    %v249 = vpop.f32.mrf.mxu0
    %v250 = vadd.f32 0.0, %v249
    %v251 = vpop.f32.mrf.mxu0
    %252 = vdwg.mxu0
    %v254 = vsel %vm159, %v129, 0
    %v256 = vsel %vm159, %v123, 0
    %v259 = vsel %vm159, %v130, 0
    %v261 = vsel %vm159, %v126, 0
    %263 = vmatprep.subr.mxu0 0.0
    %264 = vmatpush1.msra.mxu0 0.0
    %265 = vmatprep.subr.mxu0 0.0
    %266 = vmatpush1.msra.mxu0 0.0
    %267 = vmatprep.subr.mxu0 0.0
    %268 = vmatpush1.msra.mxu0 0.0
    %269 = vmatprep.subr.mxu0 0.0
    %270 = vmatpush1.msra.mxu0 0.0
    %271 = vmatprep.subr.mxu0 0.0
    %272 = vmatpush1.msra.mxu0 0.0
    %273 = vmatprep.subr.mxu0 0.0
    %274 = vmatpush1.msra.mxu0 0.0
    %275 = vmatprep.subr.mxu0 0.0
    %276 = vmatpush1.msra.mxu0 0.0
    %277 = vmatprep.subr.mxu0 0.0
    %278 = vmatpush1.msra.mxu0 0.0
    %279 = vmatprep.subr.mxu0 0.0
    %280 = vmatpush1.msra.mxu0 %v149
    %281 = vmatprep.subr.mxu0 0.0
    %282 = vmatpush1.msra.mxu0 %v148
    %283 = vmatprep.subr.mxu0 0.0
    %284 = vmatpush1.msra.mxu0 %v147
    %285 = vmatprep.subr.mxu0 0.0
    %286 = vmatpush1.msra.mxu0 %v146
    %287 = vmatprep.subr.mxu0 0.0
    %288 = vmatpush1.msra.mxu0 %v145
    %289 = vmatprep.subr.mxu0 0.0
    %290 = vmatpush1.msra.mxu0 %v144
    %291 = vmatprep.subr.mxu0 0.0
    %292 = vmatpush1.msra.mxu0 %v143
    %293 = vmatprep.subr.mxu0 0.0
    %294 = vmatpush1.msra.mxu0 %v142
    %295 = vmatprep.subr.mxu0 0.0
    %296 = vmatpush2.msra.mxu0 0.0
    %297 = vmatprep.subr.mxu0 0.0
    %298 = vmatpush2.msra.mxu0 0.0
    %299 = vmatprep.subr.mxu0 0.0
    %300 = vmatpush2.msra.mxu0 0.0
    %301 = vmatprep.subr.mxu0 0.0
    %302 = vmatpush2.msra.mxu0 0.0
    %303 = vmatprep.subr.mxu0 0.0
    %304 = vmatpush2.msra.mxu0 0.0
    %305 = vmatprep.subr.mxu0 0.0
    %306 = vmatpush2.msra.mxu0 0.0
    %307 = vmatprep.subr.mxu0 0.0
    %308 = vmatpush2.msra.mxu0 0.0
    %309 = vmatprep.subr.mxu0 0.0
    %310 = vmatpush2.msra.mxu0 0.0
    %311 = vmatprep.subr.mxu0 0.0
    %312 = vmatpush2.msra.mxu0 0.0
    %313 = vmatprep.subr.mxu0 0.0
    %314 = vmatpush2.msra.mxu0 0.0
    %315 = vmatprep.subr.mxu0 0.0
    %316 = vmatpush2.msra.mxu0 0.0
    %317 = vmatprep.subr.mxu0 0.0
    %318 = vmatpush2.msra.mxu0 0.0
    %319 = vmatprep.subr.mxu0 0.0
    %320 = vmatpush2.msra.mxu0 0.0
    %321 = vmatprep.subr.mxu0 0.0
    %322 = vmatpush2.msra.mxu0 0.0
    %323 = vmatprep.subr.mxu0 0.0
    %324 = vmatpush2.msra.mxu0 0.0
    %325 = vmatprep.subr.mxu0 0.0
    %326 = vmatpush2.msra.mxu0 0.0
    %327 = vmatprep.mubr.f32.mxu0 0.0
    %328 = vmatmul.mubr.f32.gmra.mxu0 %v254
    %v329 = vpop.f32.mrf.mxu0
    %v330 = vadd.f32 %v235, %v329
    %v331 = vpop.f32.mrf.mxu0
    %332 = vmatprep.mubr.f32.mxu0 0.0
    %333 = vmatmul.mubr.f32.gmra.mxu0 %v256
    %v334 = vpop.f32.mrf.mxu0
    %v335 = vadd.f32 %v240, %v334
    %v336 = vpop.f32.mrf.mxu0
    %337 = vmatprep.mubr.f32.mxu0 0.0
    %338 = vmatmul.mubr.f32.gmra.mxu0 %v259
    %v339 = vpop.f32.mrf.mxu0
    %v340 = vadd.f32 %v245, %v339
    %v341 = vpop.f32.mrf.mxu0
    %342 = vmatprep.mubr.f32.mxu0 0.0
    %343 = vmatmul.mubr.f32.gmra.mxu0 %v261
    %v344 = vpop.f32.mrf.mxu0
    %v345 = vadd.f32 %v250, %v344
    %v346 = vpop.f32.mrf.mxu0
    %347 = vdwg.mxu0
    %s348 = scalar_lea.vmem [#allocation5], 128
    %v349 = vld [vmem:[%s348] sm:$0xff]
    %v350 = vld [vmem:[%s348 + $0x8] sm:$0xff]
    %v351 = vld [vmem:[%s348 + $0x10] sm:$0xff]
    %v352 = vld [vmem:[%s348 + $0x18] sm:$0xff]
    %v353 = vld [vmem:[%s348 + $0x20] sm:$0xff]
    %v354 = vld [vmem:[%s348 + $0x28] sm:$0xff]
    %v355 = vld [vmem:[%s348 + $0x30] sm:$0xff]
    %v356 = vld [vmem:[%s348 + $0x38] sm:$0xff]
    %v357 = vsel %vm159, %v134, 0
    %v360 = vsel %vm159, %v140, 0
    %v362 = vsel %vm159, %v137, 0
    %v365 = vsel %vm159, %v141, 0
    %367 = vmatprep.subr.mxu0 0.0
    %368 = vmatpush1.msra.mxu0 0.0
    %369 = vmatprep.subr.mxu0 0.0
    %370 = vmatpush1.msra.mxu0 0.0
    %371 = vmatprep.subr.mxu0 0.0
    %372 = vmatpush1.msra.mxu0 0.0
    %373 = vmatprep.subr.mxu0 0.0
    %374 = vmatpush1.msra.mxu0 0.0
    %375 = vmatprep.subr.mxu0 0.0
    %376 = vmatpush1.msra.mxu0 0.0
    %377 = vmatprep.subr.mxu0 0.0
    %378 = vmatpush1.msra.mxu0 0.0
    %379 = vmatprep.subr.mxu0 0.0
    %380 = vmatpush1.msra.mxu0 0.0
    %381 = vmatprep.subr.mxu0 0.0
    %382 = vmatpush1.msra.mxu0 0.0
    %383 = vmatprep.subr.mxu0 0.0
    %384 = vmatpush1.msra.mxu0 %v356
    %385 = vmatprep.subr.mxu0 0.0
    %386 = vmatpush1.msra.mxu0 %v355
    %387 = vmatprep.subr.mxu0 0.0
    %388 = vmatpush1.msra.mxu0 %v354
    %389 = vmatprep.subr.mxu0 0.0
    %390 = vmatpush1.msra.mxu0 %v353
    %391 = vmatprep.subr.mxu0 0.0
    %392 = vmatpush1.msra.mxu0 %v352
    %393 = vmatprep.subr.mxu0 0.0
    %394 = vmatpush1.msra.mxu0 %v351
    %395 = vmatprep.subr.mxu0 0.0
    %396 = vmatpush1.msra.mxu0 %v350
    %397 = vmatprep.subr.mxu0 0.0
    %398 = vmatpush1.msra.mxu0 %v349
    %399 = vmatprep.subr.mxu0 0.0
    %400 = vmatpush2.msra.mxu0 0.0
    %401 = vmatprep.subr.mxu0 0.0
    %402 = vmatpush2.msra.mxu0 0.0
    %403 = vmatprep.subr.mxu0 0.0
    %404 = vmatpush2.msra.mxu0 0.0
    %405 = vmatprep.subr.mxu0 0.0
    %406 = vmatpush2.msra.mxu0 0.0
    %407 = vmatprep.subr.mxu0 0.0
    %408 = vmatpush2.msra.mxu0 0.0
    %409 = vmatprep.subr.mxu0 0.0
    %410 = vmatpush2.msra.mxu0 0.0
    %411 = vmatprep.subr.mxu0 0.0
    %412 = vmatpush2.msra.mxu0 0.0
    %413 = vmatprep.subr.mxu0 0.0
    %414 = vmatpush2.msra.mxu0 0.0
    %415 = vmatprep.subr.mxu0 0.0
    %416 = vmatpush2.msra.mxu0 0.0
    %417 = vmatprep.subr.mxu0 0.0
    %418 = vmatpush2.msra.mxu0 0.0
    %419 = vmatprep.subr.mxu0 0.0
    %420 = vmatpush2.msra.mxu0 0.0
    %421 = vmatprep.subr.mxu0 0.0
    %422 = vmatpush2.msra.mxu0 0.0
    %423 = vmatprep.subr.mxu0 0.0
    %424 = vmatpush2.msra.mxu0 0.0
    %425 = vmatprep.subr.mxu0 0.0
    %426 = vmatpush2.msra.mxu0 0.0
    %427 = vmatprep.subr.mxu0 0.0
    %428 = vmatpush2.msra.mxu0 0.0
    %429 = vmatprep.subr.mxu0 0.0
    %430 = vmatpush2.msra.mxu0 0.0
    %431 = vmatprep.mubr.f32.mxu0 0.0
    %432 = vmatmul.mubr.f32.gmra.mxu0 %v357
    %v433 = vpop.f32.mrf.mxu0
    %v434 = vadd.f32 0.0, %v433
    %v435 = vpop.f32.mrf.mxu0
    %436 = vmatprep.mubr.f32.mxu0 0.0
    %437 = vmatmul.mubr.f32.gmra.mxu0 %v360
    %v438 = vpop.f32.mrf.mxu0
    %v439 = vadd.f32 0.0, %v438
    %v440 = vpop.f32.mrf.mxu0
    %441 = vmatprep.mubr.f32.mxu0 0.0
    %442 = vmatmul.mubr.f32.gmra.mxu0 %v362
    %v443 = vpop.f32.mrf.mxu0
    %v444 = vadd.f32 0.0, %v443
    %v445 = vpop.f32.mrf.mxu0
    %446 = vmatprep.mubr.f32.mxu0 0.0
    %447 = vmatmul.mubr.f32.gmra.mxu0 %v365
    %v448 = vpop.f32.mrf.mxu0
    %v449 = vadd.f32 0.0, %v448
    %v450 = vpop.f32.mrf.mxu0
    %451 = vdwg.mxu0
    %v452 = vadd.f32 %v330, %v434
    %v453 = vadd.f32 %v335, %v439
    %v454 = vadd.f32 %v340, %v444
    %v455 = vadd.f32 %v345, %v449
    %v457 = vlaneseq
    %v458 = vshrl.u32 %v457, 7
    %v459 = vsub.s32 0, %v458
    %v460 = vrot.slane %v115, %v459
    %v462 = vadd.f32 %v452, %v460
    %v463 = vadd.f32 %v453, %v460
    %v464 = vadd.f32 %v454, %v460
    %v465 = vadd.f32 %v455, %v460
    %v466 = vmax.f32 %v462, 0.0
    %v467 = vmax.f32 %v463, 0.0
    %v468 = vmax.f32 %v464, 0.0
    %v469 = vmax.f32 %v465, 0.0
    %v474 = vrot.slane %v466, 7
    %v475 = vrot.slane %v467, 7
    %v476 = vsel %vm120, %v474, %v475
    %v477 = vrot.slane %v468, 7
    %v478 = vrot.slane %v469, 7
    %v479 = vsel %vm120, %v477, %v478
    %v484 = vsel %vm120, 0.0, %v474
    %v485 = vsel %vm120, 0.0, %v477
    %v486 = vrot.slane %v466, 1
    %v487 = vrot.slane %v467, 1
    %v488 = vsel %vm131, %v486, %v487
    %v489 = vrot.slane %v468, 1
    %v490 = vrot.slane %v469, 1
    %v491 = vsel %vm131, %v489, %v490
    %v496 = vsel %vm131, %v487, 0.0
    %v497 = vsel %vm131, %v490, 0.0
    %v498 = vld [vmem:[#allocation7] sm:$0xff]
    %v499 = vld [vmem:[#allocation7 + $0x8] sm:$0xff]
    %v500 = vld [vmem:[#allocation7 + $0x10] sm:$0xff]
    %v501 = vld [vmem:[#allocation7 + $0x18] sm:$0xff]
    %v502 = vld [vmem:[#allocation7 + $0x20] sm:$0xff]
    %v503 = vld [vmem:[#allocation7 + $0x28] sm:$0xff]
    %v504 = vld [vmem:[#allocation7 + $0x30] sm:$0xff]
    %v505 = vld [vmem:[#allocation7 + $0x38] sm:$0xff]
    %v506 = vld [vmem:[#allocation7 + $0x40] sm:$0xff]
    %v507 = vld [vmem:[#allocation7 + $0x48] sm:$0xff]
    %v508 = vld [vmem:[#allocation7 + $0x50] sm:$0xff]
    %v509 = vld [vmem:[#allocation7 + $0x58] sm:$0xff]
    %v510 = vld [vmem:[#allocation7 + $0x60] sm:$0xff]
    %v511 = vld [vmem:[#allocation7 + $0x68] sm:$0xff]
    %v512 = vld [vmem:[#allocation7 + $0x70] sm:$0xff]
    %v513 = vld [vmem:[#allocation7 + $0x78] sm:$0xff]
    %s514 = scalar_lea.vmem [#allocation7], 128
    %v515 = vld [vmem:[%s514] sm:$0xff]
    %v516 = vld [vmem:[%s514 + $0x8] sm:$0xff]
    %v517 = vld [vmem:[%s514 + $0x10] sm:$0xff]
    %v518 = vld [vmem:[%s514 + $0x18] sm:$0xff]
    %v519 = vld [vmem:[%s514 + $0x20] sm:$0xff]
    %v520 = vld [vmem:[%s514 + $0x28] sm:$0xff]
    %v521 = vld [vmem:[%s514 + $0x30] sm:$0xff]
    %v522 = vld [vmem:[%s514 + $0x38] sm:$0xff]
    %v523 = vld [vmem:[%s514 + $0x40] sm:$0xff]
    %v524 = vld [vmem:[%s514 + $0x48] sm:$0xff]
    %v525 = vld [vmem:[%s514 + $0x50] sm:$0xff]
    %v526 = vld [vmem:[%s514 + $0x58] sm:$0xff]
    %v527 = vld [vmem:[%s514 + $0x60] sm:$0xff]
    %v528 = vld [vmem:[%s514 + $0x68] sm:$0xff]
    %v529 = vld [vmem:[%s514 + $0x70] sm:$0xff]
    %v530 = vld [vmem:[%s514 + $0x78] sm:$0xff]
    %531 = vmatprep.subr.mxu0 0.0
    %532 = vmatpush1.msra.mxu0 %v530
    %533 = vmatprep.subr.mxu0 0.0
    %534 = vmatpush1.msra.mxu0 %v529
    %535 = vmatprep.subr.mxu0 0.0
    %536 = vmatpush1.msra.mxu0 %v528
    %537 = vmatprep.subr.mxu0 0.0
    %538 = vmatpush1.msra.mxu0 %v527
    %539 = vmatprep.subr.mxu0 0.0
    %540 = vmatpush1.msra.mxu0 %v526
    %541 = vmatprep.subr.mxu0 0.0
    %542 = vmatpush1.msra.mxu0 %v525
    %543 = vmatprep.subr.mxu0 0.0
    %544 = vmatpush1.msra.mxu0 %v524
    %545 = vmatprep.subr.mxu0 0.0
    %546 = vmatpush1.msra.mxu0 %v523
    %547 = vmatprep.subr.mxu0 0.0
    %548 = vmatpush1.msra.mxu0 %v522
    %549 = vmatprep.subr.mxu0 0.0
    %550 = vmatpush1.msra.mxu0 %v521
    %551 = vmatprep.subr.mxu0 0.0
    %552 = vmatpush1.msra.mxu0 %v520
    %553 = vmatprep.subr.mxu0 0.0
    %554 = vmatpush1.msra.mxu0 %v519
    %555 = vmatprep.subr.mxu0 0.0
    %556 = vmatpush1.msra.mxu0 %v518
    %557 = vmatprep.subr.mxu0 0.0
    %558 = vmatpush1.msra.mxu0 %v517
    %559 = vmatprep.subr.mxu0 0.0
    %560 = vmatpush1.msra.mxu0 %v516
    %561 = vmatprep.subr.mxu0 0.0
    %562 = vmatpush1.msra.mxu0 %v515
    %563 = vmatprep.subr.mxu0 0.0
    %564 = vmatpush2.msra.mxu0 0.0
    %565 = vmatprep.subr.mxu0 0.0
    %566 = vmatpush2.msra.mxu0 0.0
    %567 = vmatprep.subr.mxu0 0.0
    %568 = vmatpush2.msra.mxu0 0.0
    %569 = vmatprep.subr.mxu0 0.0
    %570 = vmatpush2.msra.mxu0 0.0
    %571 = vmatprep.subr.mxu0 0.0
    %572 = vmatpush2.msra.mxu0 0.0
    %573 = vmatprep.subr.mxu0 0.0
    %574 = vmatpush2.msra.mxu0 0.0
    %575 = vmatprep.subr.mxu0 0.0
    %576 = vmatpush2.msra.mxu0 0.0
    %577 = vmatprep.subr.mxu0 0.0
    %578 = vmatpush2.msra.mxu0 0.0
    %579 = vmatprep.subr.mxu0 0.0
    %580 = vmatpush2.msra.mxu0 0.0
    %581 = vmatprep.subr.mxu0 0.0
    %582 = vmatpush2.msra.mxu0 0.0
    %583 = vmatprep.subr.mxu0 0.0
    %584 = vmatpush2.msra.mxu0 0.0
    %585 = vmatprep.subr.mxu0 0.0
    %586 = vmatpush2.msra.mxu0 0.0
    %587 = vmatprep.subr.mxu0 0.0
    %588 = vmatpush2.msra.mxu0 0.0
    %589 = vmatprep.subr.mxu0 0.0
    %590 = vmatpush2.msra.mxu0 0.0
    %591 = vmatprep.subr.mxu0 0.0
    %592 = vmatpush2.msra.mxu0 0.0
    %593 = vmatprep.subr.mxu0 0.0
    %594 = vmatpush2.msra.mxu0 0.0
    %595 = vmatprep.mubr.f32.mxu0 0.0
    %596 = vmatmul.mubr.f32.gmra.mxu0 %v466
    %v597 = vpop.f32.mrf.mxu0
    %v598 = vadd.f32 0.0, %v597
    %v599 = vpop.f32.mrf.mxu0
    %600 = vmatprep.mubr.f32.mxu0 0.0
    %601 = vmatmul.mubr.f32.gmra.mxu0 %v467
    %v602 = vpop.f32.mrf.mxu0
    %v603 = vadd.f32 0.0, %v602
    %v604 = vpop.f32.mrf.mxu0
    %605 = vmatprep.mubr.f32.mxu0 0.0
    %606 = vmatmul.mubr.f32.gmra.mxu0 %v468
    %v607 = vpop.f32.mrf.mxu0
    %v608 = vadd.f32 0.0, %v607
    %v609 = vpop.f32.mrf.mxu0
    %610 = vmatprep.mubr.f32.mxu0 0.0
    %611 = vmatmul.mubr.f32.gmra.mxu0 %v469
    %v612 = vpop.f32.mrf.mxu0
    %v613 = vadd.f32 0.0, %v612
    %v614 = vpop.f32.mrf.mxu0
    %615 = vdwg.mxu0
    %616 = vmatprep.subr.mxu0 0.0
    %617 = vmatpush1.msra.mxu0 %v513
    %618 = vmatprep.subr.mxu0 0.0
    %619 = vmatpush1.msra.mxu0 %v512
    %620 = vmatprep.subr.mxu0 0.0
    %621 = vmatpush1.msra.mxu0 %v511
    %622 = vmatprep.subr.mxu0 0.0
    %623 = vmatpush1.msra.mxu0 %v510
    %624 = vmatprep.subr.mxu0 0.0
    %625 = vmatpush1.msra.mxu0 %v509
    %626 = vmatprep.subr.mxu0 0.0
    %627 = vmatpush1.msra.mxu0 %v508
    %628 = vmatprep.subr.mxu0 0.0
    %629 = vmatpush1.msra.mxu0 %v507
    %630 = vmatprep.subr.mxu0 0.0
    %631 = vmatpush1.msra.mxu0 %v506
    %632 = vmatprep.subr.mxu0 0.0
    %633 = vmatpush1.msra.mxu0 %v505
    %634 = vmatprep.subr.mxu0 0.0
    %635 = vmatpush1.msra.mxu0 %v504
    %636 = vmatprep.subr.mxu0 0.0
    %637 = vmatpush1.msra.mxu0 %v503
    %638 = vmatprep.subr.mxu0 0.0
    %639 = vmatpush1.msra.mxu0 %v502
    %640 = vmatprep.subr.mxu0 0.0
    %641 = vmatpush1.msra.mxu0 %v501
    %642 = vmatprep.subr.mxu0 0.0
    %643 = vmatpush1.msra.mxu0 %v500
    %644 = vmatprep.subr.mxu0 0.0
    %645 = vmatpush1.msra.mxu0 %v499
    %646 = vmatprep.subr.mxu0 0.0
    %647 = vmatpush1.msra.mxu0 %v498
    %648 = vmatprep.subr.mxu0 0.0
    %649 = vmatpush2.msra.mxu0 0.0
    %650 = vmatprep.subr.mxu0 0.0
    %651 = vmatpush2.msra.mxu0 0.0
    %652 = vmatprep.subr.mxu0 0.0
    %653 = vmatpush2.msra.mxu0 0.0
    %654 = vmatprep.subr.mxu0 0.0
    %655 = vmatpush2.msra.mxu0 0.0
    %656 = vmatprep.subr.mxu0 0.0
    %657 = vmatpush2.msra.mxu0 0.0
    %658 = vmatprep.subr.mxu0 0.0
    %659 = vmatpush2.msra.mxu0 0.0
    %660 = vmatprep.subr.mxu0 0.0
    %661 = vmatpush2.msra.mxu0 0.0
    %662 = vmatprep.subr.mxu0 0.0
    %663 = vmatpush2.msra.mxu0 0.0
    %664 = vmatprep.subr.mxu0 0.0
    %665 = vmatpush2.msra.mxu0 0.0
    %666 = vmatprep.subr.mxu0 0.0
    %667 = vmatpush2.msra.mxu0 0.0
    %668 = vmatprep.subr.mxu0 0.0
    %669 = vmatpush2.msra.mxu0 0.0
    %670 = vmatprep.subr.mxu0 0.0
    %671 = vmatpush2.msra.mxu0 0.0
    %672 = vmatprep.subr.mxu0 0.0
    %673 = vmatpush2.msra.mxu0 0.0
    %674 = vmatprep.subr.mxu0 0.0
    %675 = vmatpush2.msra.mxu0 0.0
    %676 = vmatprep.subr.mxu0 0.0
    %677 = vmatpush2.msra.mxu0 0.0
    %678 = vmatprep.subr.mxu0 0.0
    %679 = vmatpush2.msra.mxu0 0.0
    %680 = vmatprep.mubr.f32.mxu0 0.0
    %681 = vmatmul.mubr.f32.gmra.mxu0 %v484
    %v682 = vpop.f32.mrf.mxu0
    %v683 = vadd.f32 %v598, %v682
    %v684 = vpop.f32.mrf.mxu0
    %685 = vmatprep.mubr.f32.mxu0 0.0
    %686 = vmatmul.mubr.f32.gmra.mxu0 %v476
    %v687 = vpop.f32.mrf.mxu0
    %v688 = vadd.f32 %v603, %v687
    %v689 = vpop.f32.mrf.mxu0
    %690 = vmatprep.mubr.f32.mxu0 0.0
    %691 = vmatmul.mubr.f32.gmra.mxu0 %v485
    %v692 = vpop.f32.mrf.mxu0
    %v693 = vadd.f32 %v608, %v692
    %v694 = vpop.f32.mrf.mxu0
    %695 = vmatprep.mubr.f32.mxu0 0.0
    %696 = vmatmul.mubr.f32.gmra.mxu0 %v479
    %v697 = vpop.f32.mrf.mxu0
    %v698 = vadd.f32 %v613, %v697
    %v699 = vpop.f32.mrf.mxu0
    %700 = vdwg.mxu0
    %s701 = scalar_lea.vmem [#allocation7], 256
    %v702 = vld [vmem:[%s701] sm:$0xff]
    %v703 = vld [vmem:[%s701 + $0x8] sm:$0xff]
    %v704 = vld [vmem:[%s701 + $0x10] sm:$0xff]
    %v705 = vld [vmem:[%s701 + $0x18] sm:$0xff]
    %v706 = vld [vmem:[%s701 + $0x20] sm:$0xff]
    %v707 = vld [vmem:[%s701 + $0x28] sm:$0xff]
    %v708 = vld [vmem:[%s701 + $0x30] sm:$0xff]
    %v709 = vld [vmem:[%s701 + $0x38] sm:$0xff]
    %v710 = vld [vmem:[%s701 + $0x40] sm:$0xff]
    %v711 = vld [vmem:[%s701 + $0x48] sm:$0xff]
    %v712 = vld [vmem:[%s701 + $0x50] sm:$0xff]
    %v713 = vld [vmem:[%s701 + $0x58] sm:$0xff]
    %v714 = vld [vmem:[%s701 + $0x60] sm:$0xff]
    %v715 = vld [vmem:[%s701 + $0x68] sm:$0xff]
    %v716 = vld [vmem:[%s701 + $0x70] sm:$0xff]
    %v717 = vld [vmem:[%s701 + $0x78] sm:$0xff]
    %718 = vmatprep.subr.mxu0 0.0
    %719 = vmatpush1.msra.mxu0 %v717
    %720 = vmatprep.subr.mxu0 0.0
    %721 = vmatpush1.msra.mxu0 %v716
    %722 = vmatprep.subr.mxu0 0.0
    %723 = vmatpush1.msra.mxu0 %v715
    %724 = vmatprep.subr.mxu0 0.0
    %725 = vmatpush1.msra.mxu0 %v714
    %726 = vmatprep.subr.mxu0 0.0
    %727 = vmatpush1.msra.mxu0 %v713
    %728 = vmatprep.subr.mxu0 0.0
    %729 = vmatpush1.msra.mxu0 %v712
    %730 = vmatprep.subr.mxu0 0.0
    %731 = vmatpush1.msra.mxu0 %v711
    %732 = vmatprep.subr.mxu0 0.0
    %733 = vmatpush1.msra.mxu0 %v710
    %734 = vmatprep.subr.mxu0 0.0
    %735 = vmatpush1.msra.mxu0 %v709
    %736 = vmatprep.subr.mxu0 0.0
    %737 = vmatpush1.msra.mxu0 %v708
    %738 = vmatprep.subr.mxu0 0.0
    %739 = vmatpush1.msra.mxu0 %v707
    %740 = vmatprep.subr.mxu0 0.0
    %741 = vmatpush1.msra.mxu0 %v706
    %742 = vmatprep.subr.mxu0 0.0
    %743 = vmatpush1.msra.mxu0 %v705
    %744 = vmatprep.subr.mxu0 0.0
    %745 = vmatpush1.msra.mxu0 %v704
    %746 = vmatprep.subr.mxu0 0.0
    %747 = vmatpush1.msra.mxu0 %v703
    %748 = vmatprep.subr.mxu0 0.0
    %749 = vmatpush1.msra.mxu0 %v702
    %750 = vmatprep.subr.mxu0 0.0
    %751 = vmatpush2.msra.mxu0 0.0
    %752 = vmatprep.subr.mxu0 0.0
    %753 = vmatpush2.msra.mxu0 0.0
    %754 = vmatprep.subr.mxu0 0.0
    %755 = vmatpush2.msra.mxu0 0.0
    %756 = vmatprep.subr.mxu0 0.0
    %757 = vmatpush2.msra.mxu0 0.0
    %758 = vmatprep.subr.mxu0 0.0
    %759 = vmatpush2.msra.mxu0 0.0
    %760 = vmatprep.subr.mxu0 0.0
    %761 = vmatpush2.msra.mxu0 0.0
    %762 = vmatprep.subr.mxu0 0.0
    %763 = vmatpush2.msra.mxu0 0.0
    %764 = vmatprep.subr.mxu0 0.0
    %765 = vmatpush2.msra.mxu0 0.0
    %766 = vmatprep.subr.mxu0 0.0
    %767 = vmatpush2.msra.mxu0 0.0
    %768 = vmatprep.subr.mxu0 0.0
    %769 = vmatpush2.msra.mxu0 0.0
    %770 = vmatprep.subr.mxu0 0.0
    %771 = vmatpush2.msra.mxu0 0.0
    %772 = vmatprep.subr.mxu0 0.0
    %773 = vmatpush2.msra.mxu0 0.0
    %774 = vmatprep.subr.mxu0 0.0
    %775 = vmatpush2.msra.mxu0 0.0
    %776 = vmatprep.subr.mxu0 0.0
    %777 = vmatpush2.msra.mxu0 0.0
    %778 = vmatprep.subr.mxu0 0.0
    %779 = vmatpush2.msra.mxu0 0.0
    %780 = vmatprep.subr.mxu0 0.0
    %781 = vmatpush2.msra.mxu0 0.0
    %782 = vmatprep.mubr.f32.mxu0 0.0
    %783 = vmatmul.mubr.f32.gmra.mxu0 %v488
    %v784 = vpop.f32.mrf.mxu0
    %v785 = vadd.f32 0.0, %v784
    %v786 = vpop.f32.mrf.mxu0
    %787 = vmatprep.mubr.f32.mxu0 0.0
    %788 = vmatmul.mubr.f32.gmra.mxu0 %v496
    %v789 = vpop.f32.mrf.mxu0
    %v790 = vadd.f32 0.0, %v789
    %v791 = vpop.f32.mrf.mxu0
    %792 = vmatprep.mubr.f32.mxu0 0.0
    %793 = vmatmul.mubr.f32.gmra.mxu0 %v491
    %v794 = vpop.f32.mrf.mxu0
    %v795 = vadd.f32 0.0, %v794
    %v796 = vpop.f32.mrf.mxu0
    %797 = vmatprep.mubr.f32.mxu0 0.0
    %798 = vmatmul.mubr.f32.gmra.mxu0 %v497
    %v799 = vpop.f32.mrf.mxu0
    %v800 = vadd.f32 0.0, %v799
    %v801 = vpop.f32.mrf.mxu0
    %802 = vdwg.mxu0
    %v803 = vadd.f32 %v683, %v785
    %v804 = vadd.f32 %v688, %v790
    %v805 = vadd.f32 %v693, %v795
    %v806 = vadd.f32 %v698, %v800
    %v807 = vld [vmem:[#allocation8] sm:$0xff]
    %v808 = vld [vmem:[#allocation8 + $0x8] sm:$0xff]
    %v809 = vld [vmem:[#allocation8 + $0x10] sm:$0xff]
    %v810 = vld [vmem:[#allocation8 + $0x18] sm:$0xff]
    %v811 = vld [vmem:[#allocation8 + $0x20] sm:$0xff]
    %v812 = vld [vmem:[#allocation8 + $0x28] sm:$0xff]
    %v813 = vld [vmem:[#allocation8 + $0x30] sm:$0xff]
    %v814 = vld [vmem:[#allocation8 + $0x38] sm:$0xff]
    %v816 = vsel %vm159, %v85, 0
    %v819 = vsel %vm159, %v86, 0
    %v822 = vsel %vm159, %v87, 0
    %v825 = vsel %vm159, %v88, 0
    %827 = vmatprep.subr.mxu0 0.0
    %828 = vmatpush1.msra.mxu0 0.0
    %829 = vmatprep.subr.mxu0 0.0
    %830 = vmatpush1.msra.mxu0 0.0
    %831 = vmatprep.subr.mxu0 0.0
    %832 = vmatpush1.msra.mxu0 0.0
    %833 = vmatprep.subr.mxu0 0.0
    %834 = vmatpush1.msra.mxu0 0.0
    %835 = vmatprep.subr.mxu0 0.0
    %836 = vmatpush1.msra.mxu0 0.0
    %837 = vmatprep.subr.mxu0 0.0
    %838 = vmatpush1.msra.mxu0 0.0
    %839 = vmatprep.subr.mxu0 0.0
    %840 = vmatpush1.msra.mxu0 0.0
    %841 = vmatprep.subr.mxu0 0.0
    %842 = vmatpush1.msra.mxu0 0.0
    %843 = vmatprep.subr.mxu0 0.0
    %844 = vmatpush1.msra.mxu0 %v814
    %845 = vmatprep.subr.mxu0 0.0
    %846 = vmatpush1.msra.mxu0 %v813
    %847 = vmatprep.subr.mxu0 0.0
    %848 = vmatpush1.msra.mxu0 %v812
    %849 = vmatprep.subr.mxu0 0.0
    %850 = vmatpush1.msra.mxu0 %v811
    %851 = vmatprep.subr.mxu0 0.0
    %852 = vmatpush1.msra.mxu0 %v810
    %853 = vmatprep.subr.mxu0 0.0
    %854 = vmatpush1.msra.mxu0 %v809
    %855 = vmatprep.subr.mxu0 0.0
    %856 = vmatpush1.msra.mxu0 %v808
    %857 = vmatprep.subr.mxu0 0.0
    %858 = vmatpush1.msra.mxu0 %v807
    %859 = vmatprep.subr.mxu0 0.0
    %860 = vmatpush2.msra.mxu0 0.0
    %861 = vmatprep.subr.mxu0 0.0
    %862 = vmatpush2.msra.mxu0 0.0
    %863 = vmatprep.subr.mxu0 0.0
    %864 = vmatpush2.msra.mxu0 0.0
    %865 = vmatprep.subr.mxu0 0.0
    %866 = vmatpush2.msra.mxu0 0.0
    %867 = vmatprep.subr.mxu0 0.0
    %868 = vmatpush2.msra.mxu0 0.0
    %869 = vmatprep.subr.mxu0 0.0
    %870 = vmatpush2.msra.mxu0 0.0
    %871 = vmatprep.subr.mxu0 0.0
    %872 = vmatpush2.msra.mxu0 0.0
    %873 = vmatprep.subr.mxu0 0.0
    %874 = vmatpush2.msra.mxu0 0.0
    %875 = vmatprep.subr.mxu0 0.0
    %876 = vmatpush2.msra.mxu0 0.0
    %877 = vmatprep.subr.mxu0 0.0
    %878 = vmatpush2.msra.mxu0 0.0
    %879 = vmatprep.subr.mxu0 0.0
    %880 = vmatpush2.msra.mxu0 0.0
    %881 = vmatprep.subr.mxu0 0.0
    %882 = vmatpush2.msra.mxu0 0.0
    %883 = vmatprep.subr.mxu0 0.0
    %884 = vmatpush2.msra.mxu0 0.0
    %885 = vmatprep.subr.mxu0 0.0
    %886 = vmatpush2.msra.mxu0 0.0
    %887 = vmatprep.subr.mxu0 0.0
    %888 = vmatpush2.msra.mxu0 0.0
    %889 = vmatprep.subr.mxu0 0.0
    %890 = vmatpush2.msra.mxu0 0.0
    %891 = vmatprep.mubr.f32.mxu0 0.0
    %892 = vmatmul.mubr.f32.gmra.mxu0 %v816
    %v893 = vpop.f32.mrf.mxu0
    %v894 = vadd.f32 0.0, %v893
    %v895 = vpop.f32.mrf.mxu0
    %896 = vmatprep.mubr.f32.mxu0 0.0
    %897 = vmatmul.mubr.f32.gmra.mxu0 %v819
    %v898 = vpop.f32.mrf.mxu0
    %v899 = vadd.f32 0.0, %v898
    %v900 = vpop.f32.mrf.mxu0
    %901 = vmatprep.mubr.f32.mxu0 0.0
    %902 = vmatmul.mubr.f32.gmra.mxu0 %v822
    %v903 = vpop.f32.mrf.mxu0
    %v904 = vadd.f32 0.0, %v903
    %v905 = vpop.f32.mrf.mxu0
    %906 = vmatprep.mubr.f32.mxu0 0.0
    %907 = vmatmul.mubr.f32.gmra.mxu0 %v825
    %v908 = vpop.f32.mrf.mxu0
    %v909 = vadd.f32 0.0, %v908
    %v910 = vpop.f32.mrf.mxu0
    %911 = vdwg.mxu0
    %v912 = vld [vmem:[%s7] sm:$0x1]
    %v914 = vlaneseq
    %v915 = vshrl.u32 %v914, 7
    %v916 = vsub.s32 0, %v915
    %v917 = vrot.slane %v912, %v916
    %v919 = vadd.f32 %v894, %v917
    %v920 = vadd.f32 %v899, %v917
    %v921 = vadd.f32 %v904, %v917
    %v922 = vadd.f32 %v909, %v917
    %v923 = vadd.f32 %v803, %v919
    %v924 = vadd.f32 %v804, %v920
    %v925 = vadd.f32 %v805, %v921
    %v926 = vadd.f32 %v806, %v922
    %927 = vst [vmem:[#allocation10] sm:$0xff] %v923
    %928 = vst [vmem:[#allocation10 + $0x8] sm:$0xff] %v924
    %929 = vst [vmem:[#allocation10 + $0x10] sm:$0xff] %v925
    %930 = vst [vmem:[#allocation10 + $0x18] sm:$0xff] %v926
    // Predicated region
    $region50: #{tpu_custom_call.1} parent=1 // pred_check
      _
    $region51: #{tpu_custom_call.1} parent=1 // pred_check_branch
      %932 = sbr.rel (0) target = $region53
    $region52: #{tpu_custom_call.1} parent=1 // pred_region
      %s934 = ssub.s32 512, 512
      %935 = vsyncadd [#allocation4], %s934
      %s936 = sshll.u32 [#allocation10], 4
      %s937 = int_to_ptr.vmem [resolvable:$true] %s936
      %942 = dma.vmem_to_hbm [thread:$0]  %s937, 512, %s8, [#allocation4], 128, 128, 8
    $region53: #{tpu_custom_call.1} parent=1 // pred_fallthru
      _
    // Predicated region
    $region54: #{tpu_custom_call.1} parent=1 // pred_check
      _
    $region55: #{tpu_custom_call.1} parent=1 // pred_check_branch
      %944 = sbr.rel (0) target = $region57
    $region56: #{tpu_custom_call.1} parent=1 // pred_region
      %945 = dma.done [#allocation4], 512
    $region57: #{tpu_custom_call.1} parent=1 // pred_fallthru
      _
    %946 = vsyncpa [#allocation3], 1
    %947 = vsyncpa [#allocation6], 1
    %948 = vsyncpa [#allocation9], 1
    %949 = vsyncpa [#allocation4], 1

</llo_original>
